<compile_context>
chip_gen: v7x
topology: tpu7x:2x2x1
jax: 0.10.0
libtpu: 0.0.40
codegen_flags: <defaults>
</compile_context>

<pallas_src>
import jax
import jax.numpy as jnp
from jax.experimental import pallas as pl
from jax.experimental.pallas import tpu as pltpu


def _round_up(x, m):
    return ((x + m - 1) // m) * m


def q_mlp_kernel(s_ref, a_ref, w1s_ref, w1a_ref, b1_ref, w2_ref, b2_ref,
                 w3_ref, b3_ref, o_ref):
    # Layer 1: fused "concat" -> split matmuls on the MXU, f32 accumulation.
    h1 = (jnp.dot(s_ref[...], w1s_ref[...], preferred_element_type=jnp.float32)
          + jnp.dot(a_ref[...], w1a_ref[...], preferred_element_type=jnp.float32)
          + b1_ref[...])
    h1 = jnp.maximum(h1, 0.0)                              # ReLU (VPU)

    # Layer 2: (TM, 64) @ (64, 64) on the MXU.
    h2 = jnp.dot(h1, w2_ref[...], preferred_element_type=jnp.float32) + b2_ref[...]
    h2 = jnp.maximum(h2, 0.0)                              # ReLU (VPU)

    # Layer 3: 64 -> 1 as VPU multiply + XLU lane reduction (no MXU drain for
    # a 1-lane-wide result).  b3 is an SMEM scalar.
    q = jnp.sum(h2 * w3_ref[...], axis=-1, keepdims=True) + b3_ref[0, 0]
    o_ref[...] = q


def q_forward(s, a, params, *, tm=None):
    """s: (B, obs_dim), a: (B, act_dim)  ->  (B, 1) float32."""
    w1_s, w1_a, b1, w2, b2, w3, b3 = params
    s = s.astype(jnp.float32)
    a = a.astype(jnp.float32)

    B, obs_dim = s.shape
    act_dim = a.shape[1]
    H = w1_s.shape[1]
    d_in = obs_dim + act_dim

    # Batch tile: multiple of 512 for big batches (amortizes per-step overhead,
    # feeds the 256-wide MXU, fits v7x's 64 MiB VMEM with double buffering);
    # otherwise just round the batch up to the (8, .) sublane granularity.
    if tm is None:
        tm = 512 if B >= 512 else _round_up(B, 8)
    b_pad = _round_up(B, tm)
    if b_pad != B:
        pad = b_pad - B
        s = jnp.pad(s, ((0, pad), (0, 0)))
        a = jnp.pad(a, ((0, pad), (0, 0)))
    n_tiles = b_pad // tm

    # Activation tiles walk the batch; weights use constant index_maps so they
    # stay resident in VMEM across grid steps.
    act_spec = lambda cols: pl.BlockSpec((tm, cols), lambda i: (i, 0))
    res_spec = lambda shape: pl.BlockSpec(shape, lambda i: (0, 0))

    cost = pl.CostEstimate(
        flops=2 * b_pad * (d_in * H + H * H + H),
        transcendentals=0,
        bytes_accessed=4 * (b_pad * (d_in + 1)
                            + d_in * H + H * H + H + 2 * H + 1),
    )

    out = pl.pallas_call(
        q_mlp_kernel,
        out_shape=jax.ShapeDtypeStruct((b_pad, 1), jnp.float32),
        grid=(n_tiles,),
        in_specs=[
            act_spec(obs_dim),                                   # s
            act_spec(act_dim),                                   # a
            res_spec((obs_dim, H)),                              # w1_s
            res_spec((act_dim, H)),                              # w1_a
            res_spec((1, H)),                                    # b1
            res_spec((H, H)),                                    # w2
            res_spec((1, H)),                                    # b2
            res_spec((1, H)),                                    # w3 (row vector)
            pl.BlockSpec((1, 1), lambda i: (0, 0),
                         memory_space=pltpu.SMEM),               # b3 scalar
        ],
        out_specs=pl.BlockSpec((tm, 1), lambda i: (i, 0)),
        compiler_params=pltpu.CompilerParams(
            dimension_semantics=("parallel",)),
        cost_estimate=cost,
    )(s, a, w1_s, w1_a, b1, w2, b2, w3, b3)

    return out[:B]


def init_params(key, obs_dim, act_dim, hidden=64):
    """Deterministic init mimicking torch.nn.Linear defaults
    (U[-1/sqrt(fan_in), 1/sqrt(fan_in)]).  Weights stored as (in, out); the
    first layer's weight is pre-split into the s- and a-facing halves."""
    d_in = obs_dim + act_dim
    ks = jax.random.split(key, 6)

    def lin(kw, kb, fan_in, fan_out, w_shape=None):
        bound = 1.0 / jnp.sqrt(fan_in)
        w = jax.random.uniform(kw, w_shape or (fan_in, fan_out),
                               jnp.float32, -bound, bound)
        b = jax.random.uniform(kb, (1, fan_out), jnp.float32, -bound, bound)
        return w, b

    w1, b1 = lin(ks[0], ks[1], d_in, hidden)          # (d_in, H) with fan_in=d_in
    w1_s, w1_a = w1[:obs_dim], w1[obs_dim:]
    w2, b2 = lin(ks[2], ks[3], hidden, hidden)
    w3_col, b3 = lin(ks[4], ks[5], hidden, 1)         # (H, 1)
    w3 = w3_col.T                                     # store as (1, H) row vector
    return (w1_s, w1_a, b1, w2, b2, w3, b3)


def q_reference(s, a, params):
    """Pure-JAX reference for correctness check (mirrors the torch module)."""
    w1_s, w1_a, b1, w2, b2, w3, b3 = params
    x = jnp.concatenate([s, a], axis=1).astype(jnp.float32)
    w1 = jnp.concatenate([w1_s, w1_a], axis=0)
    h1 = jnp.maximum(x @ w1 + b1, 0.0)
    h2 = jnp.maximum(h1 @ w2 + b2, 0.0)
    return h2 @ w3.T + b3


if __name__ == "__main__":
    key = jax.random.PRNGKey(0)
    k_s, k_a, k_p = jax.random.split(key, 3)

    B, OBS, ACT = 8, 8, 4          # small shapes consistent with the module
    s = jax.random.normal(k_s, (B, OBS), jnp.float32)
    a = jax.random.normal(k_a, (B, ACT), jnp.float32)
    params = init_params(k_p, OBS, ACT)

    out = q_forward(s, a, params)
    out = jax.block_until_ready(out)

    ref = q_reference(s, a, params)
    assert out.shape == (B, 1), out.shape
    assert jnp.allclose(out, ref, atol=1e-5, rtol=1e-5), (out, ref)

    print("KERNEL_OK")
</pallas_src>

<mosaic_0001>
module attributes {stable_mosaic.version = 11 : i64} {
  func.func @q_mlp_kernel(%arg0: i32, %arg1: memref<8x8xf32, #tpu.memory_space<vmem>>, %arg2: memref<8x4xf32, #tpu.memory_space<vmem>>, %arg3: memref<8x64xf32, #tpu.memory_space<vmem>>, %arg4: memref<4x64xf32, #tpu.memory_space<vmem>>, %arg5: memref<1x64xf32, #tpu.memory_space<vmem>>, %arg6: memref<64x64xf32, #tpu.memory_space<vmem>>, %arg7: memref<1x64xf32, #tpu.memory_space<vmem>>, %arg8: memref<1x64xf32, #tpu.memory_space<vmem>>, %arg9: memref<1x1xf32, #tpu.memory_space<smem>>, %arg10: memref<8x1xf32, #tpu.memory_space<vmem>>) attributes {dimension_semantics = [#tpu.dimension_semantics<parallel>], iteration_bounds = array<i64: 1>, scalar_prefetch = 0 : i64, scratch_operands = 0 : i64, tpu.core_type = #tpu.core_type<tc>, window_params = [{transform_indices = @transform_0, window_bounds = array<i64: 8, 8>}, {transform_indices = @transform_1, window_bounds = array<i64: 8, 4>}, {pipeline_mode = #tpu.pipeline_mode<synchronous>, transform_indices = @transform_2, window_bounds = array<i64: 8, 64>}, {pipeline_mode = #tpu.pipeline_mode<synchronous>, transform_indices = @transform_3, window_bounds = array<i64: 4, 64>}, {pipeline_mode = #tpu.pipeline_mode<synchronous>, transform_indices = @transform_4, window_bounds = array<i64: 1, 64>}, {pipeline_mode = #tpu.pipeline_mode<synchronous>, transform_indices = @transform_5, window_bounds = array<i64: 64, 64>}, {pipeline_mode = #tpu.pipeline_mode<synchronous>, transform_indices = @transform_6, window_bounds = array<i64: 1, 64>}, {pipeline_mode = #tpu.pipeline_mode<synchronous>, transform_indices = @transform_7, window_bounds = array<i64: 1, 64>}, {transform_indices = @transform_8, window_bounds = array<i64: 1, 1>}, {transform_indices = @transform_9, window_bounds = array<i64: 8, 1>}]} {
    %c0 = arith.constant 0 : index
    %c0_0 = arith.constant 0 : index
    %0 = vector.load %arg1[%c0, %c0_0] : memref<8x8xf32, #tpu.memory_space<vmem>>, vector<8x8xf32>
    %c0_1 = arith.constant 0 : index
    %c0_2 = arith.constant 0 : index
    %1 = vector.load %arg3[%c0_1, %c0_2] : memref<8x64xf32, #tpu.memory_space<vmem>>, vector<8x64xf32>
    %cst = arith.constant dense<0.000000e+00> : vector<8x64xf32>
    %2 = tpu.matmul %0, %1, %cst {dimension_numbers = #tpu.dot_dimension_numbers<[1], [0], [0], [1], [0, 0, 1, 1], [], []>} : vector<8x8xf32>, vector<8x64xf32>, vector<8x64xf32> -> vector<8x64xf32>
    %c0_3 = arith.constant 0 : index
    %c0_4 = arith.constant 0 : index
    %3 = vector.load %arg2[%c0_3, %c0_4] : memref<8x4xf32, #tpu.memory_space<vmem>>, vector<8x4xf32>
    %c0_5 = arith.constant 0 : index
    %c0_6 = arith.constant 0 : index
    %4 = vector.load %arg4[%c0_5, %c0_6] : memref<4x64xf32, #tpu.memory_space<vmem>>, vector<4x64xf32>
    %cst_7 = arith.constant dense<0.000000e+00> : vector<8x64xf32>
    %5 = tpu.matmul %3, %4, %cst_7 {dimension_numbers = #tpu.dot_dimension_numbers<[1], [0], [0], [1], [0, 0, 1, 1], [], []>} : vector<8x4xf32>, vector<4x64xf32>, vector<8x64xf32> -> vector<8x64xf32>
    %6 = arith.addf %2, %5 : vector<8x64xf32>
    %c0_8 = arith.constant 0 : index
    %c0_9 = arith.constant 0 : index
    %7 = vector.load %arg5[%c0_8, %c0_9] : memref<1x64xf32, #tpu.memory_space<vmem>>, vector<1x64xf32>
    %8 = vector.broadcast %7 : vector<1x64xf32> to vector<8x64xf32>
    %9 = arith.addf %6, %8 : vector<8x64xf32>
    %cst_10 = arith.constant 0.000000e+00 : f32
    %10 = vector.broadcast %cst_10 : f32 to vector<8x64xf32>
    %11 = arith.maximumf %9, %10 : vector<8x64xf32>
    %c0_11 = arith.constant 0 : index
    %c0_12 = arith.constant 0 : index
    %12 = vector.load %arg6[%c0_11, %c0_12] : memref<64x64xf32, #tpu.memory_space<vmem>>, vector<64x64xf32>
    %cst_13 = arith.constant dense<0.000000e+00> : vector<8x64xf32>
    %13 = tpu.matmul %11, %12, %cst_13 {dimension_numbers = #tpu.dot_dimension_numbers<[1], [0], [0], [1], [0, 0, 1, 1], [], []>} : vector<8x64xf32>, vector<64x64xf32>, vector<8x64xf32> -> vector<8x64xf32>
    %c0_14 = arith.constant 0 : index
    %c0_15 = arith.constant 0 : index
    %14 = vector.load %arg7[%c0_14, %c0_15] : memref<1x64xf32, #tpu.memory_space<vmem>>, vector<1x64xf32>
    %15 = vector.broadcast %14 : vector<1x64xf32> to vector<8x64xf32>
    %16 = arith.addf %13, %15 : vector<8x64xf32>
    %cst_16 = arith.constant 0.000000e+00 : f32
    %17 = vector.broadcast %cst_16 : f32 to vector<8x64xf32>
    %18 = arith.maximumf %16, %17 : vector<8x64xf32>
    %c0_17 = arith.constant 0 : index
    %c0_18 = arith.constant 0 : index
    %19 = vector.load %arg8[%c0_17, %c0_18] : memref<1x64xf32, #tpu.memory_space<vmem>>, vector<1x64xf32>
    %20 = vector.broadcast %19 : vector<1x64xf32> to vector<8x64xf32>
    %21 = arith.mulf %18, %20 : vector<8x64xf32>
    %cst_19 = arith.constant dense<0.000000e+00> : vector<8xf32>
    %22 = vector.multi_reduction <add>, %21, %cst_19 [1] : vector<8x64xf32> to vector<8xf32>
    %23 = vector.shape_cast %22 : vector<8xf32> to vector<8x1xf32>
    %c0_20 = arith.constant 0 : index
    %c0_21 = arith.constant 0 : index
    %24 = memref.load %arg9[%c0_20, %c0_21] : memref<1x1xf32, #tpu.memory_space<smem>>
    %25 = vector.broadcast %24 : f32 to vector<8x1xf32>
    %26 = arith.addf %23, %25 : vector<8x1xf32>
    %c0_22 = arith.constant 0 : index
    %c0_23 = arith.constant 0 : index
    %27 = vector.load %arg10[%c0_22, %c0_23] : memref<8x1xf32, #tpu.memory_space<vmem>>, vector<8x1xf32>
    tpu.vector_store %arg10[%c0_22, %c0_23], %26 {strides = array<i32>} : memref<8x1xf32, #tpu.memory_space<vmem>>, vector<8x1xf32>,
    return
  }
  func.func @transform_0(%arg0: i32) -> (i32, i32) {
    %c0_i32 = arith.constant 0 : i32
    %c0_i32_0 = arith.constant 0 : i32
    return %arg0, %c0_i32 : i32, i32
  }
  func.func @transform_1(%arg0: i32) -> (i32, i32) {
    %c0_i32 = arith.constant 0 : i32
    %c0_i32_0 = arith.constant 0 : i32
    return %arg0, %c0_i32 : i32, i32
  }
  func.func @transform_2(%arg0: i32) -> (i32, i32) {
    %c0_i32 = arith.constant 0 : i32
    %c0_i32_0 = arith.constant 0 : i32
    %c0_i32_1 = arith.constant 0 : i32
    return %c0_i32, %c0_i32_0 : i32, i32
  }
  func.func @transform_3(%arg0: i32) -> (i32, i32) {
    %c0_i32 = arith.constant 0 : i32
    %c0_i32_0 = arith.constant 0 : i32
    %c0_i32_1 = arith.constant 0 : i32
    return %c0_i32, %c0_i32_0 : i32, i32
  }
  func.func @transform_4(%arg0: i32) -> (i32, i32) {
    %c0_i32 = arith.constant 0 : i32
    %c0_i32_0 = arith.constant 0 : i32
    %c0_i32_1 = arith.constant 0 : i32
    return %c0_i32, %c0_i32_0 : i32, i32
  }
  func.func @transform_5(%arg0: i32) -> (i32, i32) {
    %c0_i32 = arith.constant 0 : i32
    %c0_i32_0 = arith.constant 0 : i32
    %c0_i32_1 = arith.constant 0 : i32
    return %c0_i32, %c0_i32_0 : i32, i32
  }
  func.func @transform_6(%arg0: i32) -> (i32, i32) {
    %c0_i32 = arith.constant 0 : i32
    %c0_i32_0 = arith.constant 0 : i32
    %c0_i32_1 = arith.constant 0 : i32
    return %c0_i32, %c0_i32_0 : i32, i32
  }
  func.func @transform_7(%arg0: i32) -> (i32, i32) {
    %c0_i32 = arith.constant 0 : i32
    %c0_i32_0 = arith.constant 0 : i32
    %c0_i32_1 = arith.constant 0 : i32
    return %c0_i32, %c0_i32_0 : i32, i32
  }
  func.func @transform_8(%arg0: i32) -> (i32, i32) {
    %c0_i32 = arith.constant 0 : i32
    %c0_i32_0 = arith.constant 0 : i32
    %c0_i32_1 = arith.constant 0 : i32
    return %c0_i32, %c0_i32_0 : i32, i32
  }
  func.func @transform_9(%arg0: i32) -> (i32, i32) {
    %c0_i32 = arith.constant 0 : i32
    %c0_i32_0 = arith.constant 0 : i32
    return %arg0, %c0_i32 : i32, i32
  }
}

</mosaic_0001>

<llo_original>
// kernel: tpu_custom_call.1
$region0: #{tpu_custom_call.1}
  #allocation0 [shape = 'u32[]', space=smem, size = 0x4, offset = 0x4, fixed_abs, tag = 'smem constant byte address 0x4 - core index']
  #allocation1 [shape = 'u32[144,128]{1,0:T(1,128)}', space=vmem, size = 0x12000, scoped, tag = 'internal scratch']
  #allocation2 [shape = 'f32[1,1]{1,0:T(1,128)S(6)}', space=smem, size = 0x200, scoped, tag = 'scoped memory for tpu_custom_call.1']
  %s0 = inlined_call_operand.vmem [shape: f32[8,8], index: 0, kind: input, shape index: {}]
  %s1 = inlined_call_operand.vmem [shape: f32[8,4], index: 1, kind: input, shape index: {}]
  %s2 = inlined_call_operand.vmem [shape: f32[8,64], index: 2, kind: input, shape index: {}]
  %s3 = inlined_call_operand.vmem [shape: f32[4,64], index: 3, kind: input, shape index: {}]
  %s4 = inlined_call_operand.vmem [shape: f32[1,64], index: 4, kind: input, shape index: {}]
  %s5 = inlined_call_operand.hbm [shape: f32[64,64], index: 5, kind: input, shape index: {}]
  %s6 = inlined_call_operand.vmem [shape: f32[1,64], index: 6, kind: input, shape index: {}]
  %s7 = inlined_call_operand.vmem [shape: f32[1,64], index: 7, kind: input, shape index: {}]
  %s8 = inlined_call_operand.<no memory space> [shape: f32[1,1], index: 8, kind: input, shape index: {}]
  %s9 = inlined_call_operand.vmem [shape: f32[8,1], index: 9, kind: output, shape index: {}]
  %s10 = sld [smem:[#allocation0]]
  $region50: #{tpu_custom_call.1} parent=0
    _
  %s12 = ssub.s32 1, %s10
  %s13 = scalar_select 0, %s12, %s10
  %14 = sst [smem:[#allocation2]] %s8
  $region1: #{tpu_custom_call.1} parent=0
    #allocation3 [shape = 'u8[32768]{0}', space=vmem, size = 0x8000, scoped, tag = 'input window, operand 5, single buffered']
    #allocation4 [shape = 's32[1]{0}', space=sflag, size = 0x4, scoped, tag = 'scoped memory for tpu_custom_call.1']
    %15 = vsyncpa [#allocation4], 0
    // Predicated region
    $region2: #{tpu_custom_call.1} parent=1 // pred_check
      _
    $region3: #{tpu_custom_call.1} parent=1 // pred_check_branch
      %17 = sbr.rel (0) target = $region5
    $region4: #{tpu_custom_call.1} parent=1 // pred_region
      _
    $region5: #{tpu_custom_call.1} parent=1 // pred_fallthru
      _
    // Predicated region
    $region6: #{tpu_custom_call.1} parent=1 // pred_check
      _
    $region7: #{tpu_custom_call.1} parent=1 // pred_check_branch
      %19 = sbr.rel (0) target = $region9
    $region8: #{tpu_custom_call.1} parent=1 // pred_region
      _
    $region9: #{tpu_custom_call.1} parent=1 // pred_fallthru
      _
    // Predicated region
    $region10: #{tpu_custom_call.1} parent=1 // pred_check
      _
    $region11: #{tpu_custom_call.1} parent=1 // pred_check_branch
      %21 = sbr.rel (0) target = $region13
    $region12: #{tpu_custom_call.1} parent=1 // pred_region
      _
    $region13: #{tpu_custom_call.1} parent=1 // pred_fallthru
      _
    // Predicated region
    $region14: #{tpu_custom_call.1} parent=1 // pred_check
      _
    $region15: #{tpu_custom_call.1} parent=1 // pred_check_branch
      %23 = sbr.rel (0) target = $region17
    $region16: #{tpu_custom_call.1} parent=1 // pred_region
      _
    $region17: #{tpu_custom_call.1} parent=1 // pred_fallthru
      _
    // Predicated region
    $region18: #{tpu_custom_call.1} parent=1 // pred_check
      _
    $region19: #{tpu_custom_call.1} parent=1 // pred_check_branch
      %25 = sbr.rel (0) target = $region21
    $region20: #{tpu_custom_call.1} parent=1 // pred_region
      _
    $region21: #{tpu_custom_call.1} parent=1 // pred_fallthru
      _
    // Predicated region
    $region22: #{tpu_custom_call.1} parent=1 // pred_check
      _
    $region23: #{tpu_custom_call.1} parent=1 // pred_check_branch
      %27 = sbr.rel (0) target = $region25
    $region24: #{tpu_custom_call.1} parent=1 // pred_region
      %s29 = ssub.s32 1024, 1024
      %30 = vsyncadd [#allocation4], %s29
      %s31 = sshll.u32 [#allocation3], 4
      %s32 = int_to_ptr.vmem [resolvable:$true] %s31
      %37 = dma.hbm_to_vmem [thread:$0]  %s5, 1024, %s32, [#allocation4], 128, 128, 8
    $region25: #{tpu_custom_call.1} parent=1 // pred_fallthru
      _
    // Predicated region
    $region26: #{tpu_custom_call.1} parent=1 // pred_check
      _
    $region27: #{tpu_custom_call.1} parent=1 // pred_check_branch
      %39 = sbr.rel (0) target = $region29
    $region28: #{tpu_custom_call.1} parent=1 // pred_region
      _
    $region29: #{tpu_custom_call.1} parent=1 // pred_fallthru
      _
    // Predicated region
    $region30: #{tpu_custom_call.1} parent=1 // pred_check
      _
    $region31: #{tpu_custom_call.1} parent=1 // pred_check_branch
      %41 = sbr.rel (0) target = $region33
    $region32: #{tpu_custom_call.1} parent=1 // pred_region
      _
    $region33: #{tpu_custom_call.1} parent=1 // pred_fallthru
      _
    // Predicated region
    $region34: #{tpu_custom_call.1} parent=1 // pred_check
      _
    $region35: #{tpu_custom_call.1} parent=1 // pred_check_branch
      %43 = sbr.rel (0) target = $region37
    $region36: #{tpu_custom_call.1} parent=1 // pred_region
      _
    $region37: #{tpu_custom_call.1} parent=1 // pred_fallthru
      _
    // Predicated region
    $region38: #{tpu_custom_call.1} parent=1 // pred_check
      _
    $region39: #{tpu_custom_call.1} parent=1 // pred_check_branch
      %45 = sbr.rel (0) target = $region41
    $region40: #{tpu_custom_call.1} parent=1 // pred_region
      %46 = dma.done [#allocation4], 1024
    $region41: #{tpu_custom_call.1} parent=1 // pred_fallthru
      _
    %v47 = vld [vmem:[%s0] sm:$0xff]
    %v48 = vld [vmem:[%s2] sm:$0xff]
    %v49 = vld [vmem:[%s1] sm:$0xff]
    %v50 = vld [vmem:[%s3] sm:$0xf]
    %vm51 = vcmask 31744
    %v53 = vsel %vm51, %v49, 0
    %vm55 = vcmask 1043456
    %v57 = vsel %vm55, %v50, 0
    %59 = vmatprep.subr.mxu0 0.0
    %60 = vmatpush1.msra.mxu0 %v57
    %61 = vmatprep.subr.mxu0 0.0
    %62 = vmatpush1.msra.mxu0 0.0
    %63 = vmatprep.subr.mxu0 0.0
    %64 = vmatpush1.msra.mxu0 0.0
    %65 = vmatprep.subr.mxu0 0.0
    %66 = vmatpush1.msra.mxu0 0.0
    %67 = vmatprep.subr.mxu0 0.0
    %68 = vmatpush1.msra.mxu0 0.0
    %69 = vmatprep.subr.mxu0 0.0
    %70 = vmatpush1.msra.mxu0 0.0
    %71 = vmatprep.subr.mxu0 0.0
    %72 = vmatpush1.msra.mxu0 0.0
    %73 = vmatprep.subr.mxu0 0.0
    %74 = vmatpush1.msra.mxu0 0.0
    %75 = vmatprep.subr.mxu0 0.0
    %76 = vmatpush1.msra.mxu0 0.0
    %77 = vmatprep.subr.mxu0 0.0
    %78 = vmatpush1.msra.mxu0 0.0
    %79 = vmatprep.subr.mxu0 0.0
    %80 = vmatpush1.msra.mxu0 0.0
    %81 = vmatprep.subr.mxu0 0.0
    %82 = vmatpush1.msra.mxu0 0.0
    %83 = vmatprep.subr.mxu0 0.0
    %84 = vmatpush1.msra.mxu0 0.0
    %85 = vmatprep.subr.mxu0 0.0
    %86 = vmatpush1.msra.mxu0 0.0
    %87 = vmatprep.subr.mxu0 0.0
    %88 = vmatpush1.msra.mxu0 0.0
    %89 = vmatprep.subr.mxu0 0.0
    %90 = vmatpush1.msra.mxu0 0.0
    %91 = vmatprep.subr.mxu0 0.0
    %92 = vmatpush1.msra.mxu0 0.0
    %93 = vmatprep.subr.mxu0 0.0
    %94 = vmatpush1.msra.mxu0 0.0
    %95 = vmatprep.subr.mxu0 0.0
    %96 = vmatpush1.msra.mxu0 0.0
    %97 = vmatprep.subr.mxu0 0.0
    %98 = vmatpush1.msra.mxu0 0.0
    %99 = vmatprep.subr.mxu0 0.0
    %100 = vmatpush1.msra.mxu0 0.0
    %101 = vmatprep.subr.mxu0 0.0
    %102 = vmatpush1.msra.mxu0 0.0
    %103 = vmatprep.subr.mxu0 0.0
    %104 = vmatpush1.msra.mxu0 0.0
    %105 = vmatprep.subr.mxu0 0.0
    %106 = vmatpush1.msra.mxu0 0.0
    %107 = vmatprep.subr.mxu0 0.0
    %108 = vmatpush1.msra.mxu0 0.0
    %109 = vmatprep.subr.mxu0 0.0
    %110 = vmatpush1.msra.mxu0 0.0
    %111 = vmatprep.subr.mxu0 0.0
    %112 = vmatpush1.msra.mxu0 0.0
    %113 = vmatprep.subr.mxu0 0.0
    %114 = vmatpush1.msra.mxu0 0.0
    %115 = vmatprep.subr.mxu0 0.0
    %116 = vmatpush1.msra.mxu0 0.0
    %117 = vmatprep.subr.mxu0 0.0
    %118 = vmatpush1.msra.mxu0 0.0
    %119 = vmatprep.subr.mxu0 0.0
    %120 = vmatpush1.msra.mxu0 0.0
    %121 = vmatprep.subr.mxu0 0.0
    %122 = vmatpush1.msra.mxu0 0.0
    %123 = vmatprep.mubr.f32.mxu0 0.0
    %124 = vmatmul.mubr.f32.gmra.mrb[0].mxu0 %v53
    %v125 = vpop.f32.mrb[0].mxu0
    %v126 = vadd.f32 0.0, %v125
    %v127 = vpop.f32.mrb[0].mxu0
    %128 = vdwg.mxu0
    %vm129 = vcmask 64512
    %v131 = vsel %vm129, %v47, 0
    %133 = vmatprep.subr.mxu0 0.0
    %134 = vmatpush1.msra.mxu0 %v48
    %135 = vmatprep.subr.mxu0 0.0
    %136 = vmatpush1.msra.mxu0 0.0
    %137 = vmatprep.subr.mxu0 0.0
    %138 = vmatpush1.msra.mxu0 0.0
    %139 = vmatprep.subr.mxu0 0.0
    %140 = vmatpush1.msra.mxu0 0.0
    %141 = vmatprep.subr.mxu0 0.0
    %142 = vmatpush1.msra.mxu0 0.0
    %143 = vmatprep.subr.mxu0 0.0
    %144 = vmatpush1.msra.mxu0 0.0
    %145 = vmatprep.subr.mxu0 0.0
    %146 = vmatpush1.msra.mxu0 0.0
    %147 = vmatprep.subr.mxu0 0.0
    %148 = vmatpush1.msra.mxu0 0.0
    %149 = vmatprep.subr.mxu0 0.0
    %150 = vmatpush1.msra.mxu0 0.0
    %151 = vmatprep.subr.mxu0 0.0
    %152 = vmatpush1.msra.mxu0 0.0
    %153 = vmatprep.subr.mxu0 0.0
    %154 = vmatpush1.msra.mxu0 0.0
    %155 = vmatprep.subr.mxu0 0.0
    %156 = vmatpush1.msra.mxu0 0.0
    %157 = vmatprep.subr.mxu0 0.0
    %158 = vmatpush1.msra.mxu0 0.0
    %159 = vmatprep.subr.mxu0 0.0
    %160 = vmatpush1.msra.mxu0 0.0
    %161 = vmatprep.subr.mxu0 0.0
    %162 = vmatpush1.msra.mxu0 0.0
    %163 = vmatprep.subr.mxu0 0.0
    %164 = vmatpush1.msra.mxu0 0.0
    %165 = vmatprep.subr.mxu0 0.0
    %166 = vmatpush1.msra.mxu0 0.0
    %167 = vmatprep.subr.mxu0 0.0
    %168 = vmatpush1.msra.mxu0 0.0
    %169 = vmatprep.subr.mxu0 0.0
    %170 = vmatpush1.msra.mxu0 0.0
    %171 = vmatprep.subr.mxu0 0.0
    %172 = vmatpush1.msra.mxu0 0.0
    %173 = vmatprep.subr.mxu0 0.0
    %174 = vmatpush1.msra.mxu0 0.0
    %175 = vmatprep.subr.mxu0 0.0
    %176 = vmatpush1.msra.mxu0 0.0
    %177 = vmatprep.subr.mxu0 0.0
    %178 = vmatpush1.msra.mxu0 0.0
    %179 = vmatprep.subr.mxu0 0.0
    %180 = vmatpush1.msra.mxu0 0.0
    %181 = vmatprep.subr.mxu0 0.0
    %182 = vmatpush1.msra.mxu0 0.0
    %183 = vmatprep.subr.mxu0 0.0
    %184 = vmatpush1.msra.mxu0 0.0
    %185 = vmatprep.subr.mxu0 0.0
    %186 = vmatpush1.msra.mxu0 0.0
    %187 = vmatprep.subr.mxu0 0.0
    %188 = vmatpush1.msra.mxu0 0.0
    %189 = vmatprep.subr.mxu0 0.0
    %190 = vmatpush1.msra.mxu0 0.0
    %191 = vmatprep.subr.mxu0 0.0
    %192 = vmatpush1.msra.mxu0 0.0
    %193 = vmatprep.subr.mxu0 0.0
    %194 = vmatpush1.msra.mxu0 0.0
    %195 = vmatprep.subr.mxu0 0.0
    %196 = vmatpush1.msra.mxu0 0.0
    %197 = vmatprep.mubr.f32.mxu0 0.0
    %198 = vmatmul.mubr.f32.gmra.mrb[0].mxu0 %v131
    %v199 = vpop.f32.mrb[0].mxu0
    %v200 = vadd.f32 %v126, %v199
    %v201 = vpop.f32.mrb[0].mxu0
    %202 = vdwg.mxu0
    %v203 = vld [vmem:[%s4] sm:$0x1]
    %v205 = vlaneseq
    %v206 = vshrl.u32 %v205, 7
    %v207 = vsub.s32 0, %v206
    %v208 = vrot.slane %v203, %v207
    %v210 = vadd.f32 %v200, %v208
    %v211 = vmax.f32 %v210, 0.0
    %v212 = vld [vmem:[#allocation3] sm:$0xff]
    %v213 = vld [vmem:[#allocation3 + $0x8] sm:$0xff]
    %v214 = vld [vmem:[#allocation3 + $0x10] sm:$0xff]
    %v215 = vld [vmem:[#allocation3 + $0x18] sm:$0xff]
    %v216 = vld [vmem:[#allocation3 + $0x20] sm:$0xff]
    %v217 = vld [vmem:[#allocation3 + $0x28] sm:$0xff]
    %v218 = vld [vmem:[#allocation3 + $0x30] sm:$0xff]
    %v219 = vld [vmem:[#allocation3 + $0x38] sm:$0xff]
    %v220 = vld [vmem:[%s6] sm:$0x1]
    %v222 = vlaneseq
    %v223 = vshrl.u32 %v222, 7
    %v224 = vsub.s32 0, %v223
    %v225 = vrot.slane %v220, %v224
    %vm227 = vcmask 523264
    %v229 = vsel %vm227, %v211, 0
    %231 = vmatprep.subr.mxu0 0.0
    %232 = vmatpush1.msra.mxu0 %v212
    %233 = vmatprep.subr.mxu0 0.0
    %234 = vmatpush1.msra.mxu0 %v213
    %235 = vmatprep.subr.mxu0 0.0
    %236 = vmatpush1.msra.mxu0 %v214
    %237 = vmatprep.subr.mxu0 0.0
    %238 = vmatpush1.msra.mxu0 %v215
    %239 = vmatprep.subr.mxu0 0.0
    %240 = vmatpush1.msra.mxu0 %v216
    %241 = vmatprep.subr.mxu0 0.0
    %242 = vmatpush1.msra.mxu0 %v217
    %243 = vmatprep.subr.mxu0 0.0
    %244 = vmatpush1.msra.mxu0 %v218
    %245 = vmatprep.subr.mxu0 0.0
    %246 = vmatpush1.msra.mxu0 %v219
    %247 = vmatprep.subr.mxu0 0.0
    %248 = vmatpush1.msra.mxu0 0.0
    %249 = vmatprep.subr.mxu0 0.0
    %250 = vmatpush1.msra.mxu0 0.0
    %251 = vmatprep.subr.mxu0 0.0
    %252 = vmatpush1.msra.mxu0 0.0
    %253 = vmatprep.subr.mxu0 0.0
    %254 = vmatpush1.msra.mxu0 0.0
    %255 = vmatprep.subr.mxu0 0.0
    %256 = vmatpush1.msra.mxu0 0.0
    %257 = vmatprep.subr.mxu0 0.0
    %258 = vmatpush1.msra.mxu0 0.0
    %259 = vmatprep.subr.mxu0 0.0
    %260 = vmatpush1.msra.mxu0 0.0
    %261 = vmatprep.subr.mxu0 0.0
    %262 = vmatpush1.msra.mxu0 0.0
    %263 = vmatprep.subr.mxu0 0.0
    %264 = vmatpush1.msra.mxu0 0.0
    %265 = vmatprep.subr.mxu0 0.0
    %266 = vmatpush1.msra.mxu0 0.0
    %267 = vmatprep.subr.mxu0 0.0
    %268 = vmatpush1.msra.mxu0 0.0
    %269 = vmatprep.subr.mxu0 0.0
    %270 = vmatpush1.msra.mxu0 0.0
    %271 = vmatprep.subr.mxu0 0.0
    %272 = vmatpush1.msra.mxu0 0.0
    %273 = vmatprep.subr.mxu0 0.0
    %274 = vmatpush1.msra.mxu0 0.0
    %275 = vmatprep.subr.mxu0 0.0
    %276 = vmatpush1.msra.mxu0 0.0
    %277 = vmatprep.subr.mxu0 0.0
    %278 = vmatpush1.msra.mxu0 0.0
    %279 = vmatprep.subr.mxu0 0.0
    %280 = vmatpush1.msra.mxu0 0.0
    %281 = vmatprep.subr.mxu0 0.0
    %282 = vmatpush1.msra.mxu0 0.0
    %283 = vmatprep.subr.mxu0 0.0
    %284 = vmatpush1.msra.mxu0 0.0
    %285 = vmatprep.subr.mxu0 0.0
    %286 = vmatpush1.msra.mxu0 0.0
    %287 = vmatprep.subr.mxu0 0.0
    %288 = vmatpush1.msra.mxu0 0.0
    %289 = vmatprep.subr.mxu0 0.0
    %290 = vmatpush1.msra.mxu0 0.0
    %291 = vmatprep.subr.mxu0 0.0
    %292 = vmatpush1.msra.mxu0 0.0
    %293 = vmatprep.subr.mxu0 0.0
    %294 = vmatpush1.msra.mxu0 0.0
    %295 = vmatprep.mubr.f32.mxu0 0.0
    %296 = vmatmul.mubr.f32.gmra.mrb[0].mxu0 %v229
    %v297 = vpop.f32.mrb[0].mxu0
    %v298 = vadd.f32 %v225, %v297
    %v299 = vpop.f32.mrb[0].mxu0
    %300 = vdwg.mxu0
    %v301 = vmax.f32 %v298, 0.0
    %v302 = vld [vmem:[%s7] sm:$0x1]
    %v304 = vlaneseq
    %v305 = vshrl.u32 %v304, 7
    %v306 = vsub.s32 0, %v305
    %v307 = vrot.slane %v302, %v306
    %v309 = vmul.f32 %v301, %v307
    %v310 = vsel %vm227, %v309, 0.0
    %311 = vadd.xlane.f32.xlu0 %v310
    %v312 = vpop.xlane.xlu0 %311
    %s313 = sld [smem:[#allocation2]]
    %v314 = vstv %s313
    %v315 = vadd.f32 %v312, %v314
    %vm316 = vcmask 7168
    %317 = vst.msk [vmem:[%s9] sm:$0xff] %vm316, %v315
    // Predicated region
    $region42: #{tpu_custom_call.1} parent=1 // pred_check
      _
    $region43: #{tpu_custom_call.1} parent=1 // pred_check_branch
      %319 = sbr.rel (0) target = $region45
    $region44: #{tpu_custom_call.1} parent=1 // pred_region
      _
    $region45: #{tpu_custom_call.1} parent=1 // pred_fallthru
      _
    // Predicated region
    $region46: #{tpu_custom_call.1} parent=1 // pred_check
      _
    $region47: #{tpu_custom_call.1} parent=1 // pred_check_branch
      %321 = sbr.rel (0) target = $region49
    $region48: #{tpu_custom_call.1} parent=1 // pred_region
      _
    $region49: #{tpu_custom_call.1} parent=1 // pred_fallthru
      _
    %322 = vsyncpa [#allocation4], 1

</llo_original>
